<compile_context>
chip_gen: v6e
topology: v6e:2x2x1
jax: 0.10.0
libtpu: 0.0.40
codegen_flags: <defaults>
</compile_context>

<pallas_src>
import functools

import jax
import jax.numpy as jnp
import numpy as np
from jax.experimental import pallas as pl
from jax.experimental.pallas import tpu as pltpu


# ----------------------------------------------------------------------------
# NTU skeleton adjacency / Laplacian (deterministic, built in-script)
# ----------------------------------------------------------------------------
_NTU_BONE_PAIRS = (
    (0, 1), (0, 12), (0, 16), (1, 20), (2, 3), (2, 20), (4, 5), (4, 20),
    (5, 6), (6, 7), (7, 21), (7, 22), (8, 9), (8, 20), (9, 10), (10, 11),
    (11, 23), (11, 24), (12, 13), (13, 14), (14, 15), (16, 17), (17, 18),
    (18, 19),
)


def build_laplacian() -> jnp.ndarray:
    W = np.zeros((25, 25), dtype=np.int32)
    for i, j in _NTU_BONE_PAIRS:
        W[i, j] = 1
    W = (W + W.T).astype(np.float32)
    L = np.diag(W.sum(axis=1)) - W
    return jnp.asarray(L, dtype=jnp.float32)


def _round_up(x: int, m: int) -> int:
    return ((x + m - 1) // m) * m


def _vmem_budget_bytes() -> int:
    """Scoped-VMEM budget: half of physical VMEM, capped at 48 MiB.

    v5e/v6e (128 MiB physical) -> 48 MiB; v7x (64 MiB physical) -> 32 MiB.
    Falls back to 32 MiB if the hardware query is unavailable.
    """
    cap = 64 * 1024 * 1024
    try:
        info = pltpu.get_tpu_info()
        cap = int(getattr(info, "vmem_capacity_bytes", cap)) or cap
    except Exception:
        pass
    return min(cap // 2, 48 * 1024 * 1024)


# ----------------------------------------------------------------------------
# Pallas kernel: streaming per-row T-sums of the flattened (R, T) slab.
# ----------------------------------------------------------------------------
def _row_tsum_kernel(x_ref, out_ref, *, total_t: int, num_t_chunks: int):
    """Grid = (row_tiles [parallel], t_chunks [arbitrary]).

    x_ref:   (tb, tc) chunk of the flattened (R, T) input, in its HBM dtype.
    out_ref: (tb, 1) fp32 T-sum accumulator (block resident across the t axis).
    """
    tb, tc = x_ref.shape
    rem = total_t % tc          # static; nonzero only if the tail chunk is ragged

    def contrib(mask_tail: bool):
        x = x_ref[...]
        if mask_tail:
            # Zero the stale lanes past T (NaN-safe select).  Only traced into
            # the pl.when(last-chunk) branch, i.e. off the hot path.
            col = jax.lax.broadcasted_iota(jnp.int32, (1, tc), 1)
            x = jnp.where(col < rem, x, jnp.zeros_like(x))
        if x.dtype == jnp.float32:
            # f32: exact lane reduction; no upcast needed.
            return jnp.sum(x, axis=-1, keepdims=True)
        # Sub-f32 (bf16/...): reduce on the otherwise-idle MXU with an f32
        # accumulator.  x * 1 is exact, so this equals upcast-then-sum.
        ones = jnp.ones((tc, 1), dtype=x.dtype)
        return jnp.dot(x, ones, preferred_element_type=jnp.float32)

    if num_t_chunks == 1:
        # Common case (whole T fits in one block): single direct store, no
        # accumulator read-modify-write at all.
        out_ref[...] = contrib(mask_tail=False)
        return

    j = pl.program_id(1)

    @pl.when(j == 0)
    def _init():
        out_ref[...] = jnp.zeros_like(out_ref)

    if rem == 0:
        out_ref[...] += contrib(mask_tail=False)
    else:
        @pl.when(j < num_t_chunks - 1)
        def _full_chunk():
            out_ref[...] += contrib(mask_tail=False)

        @pl.when(j == num_t_chunks - 1)
        def _tail_chunk():
            out_ref[...] += contrib(mask_tail=True)


# ----------------------------------------------------------------------------
# Wrapper
# ----------------------------------------------------------------------------
def laplacian_regularizer(target: jnp.ndarray, penalty, *,
                          row_block=None, t_chunk=None,
                          cast_to_bf16: bool = False) -> jnp.ndarray:
    """target: (N, C, V=25, T). Returns penalty * sum_{n,c} m @ L @ m, m = mean_t."""
    N, C, V, T = target.shape
    if V != 25:
        raise ValueError("joint dimension must be 25 (NTU skeleton)")
    L = build_laplacian()

    # Flatten to a dense 2-D slab: merging leading dims is free (no copy) and
    # avoids the 25 -> 32 sublane padding a (..., 25, T) block layout pays.
    R = N * C * V
    x = target.reshape(R, T)
    if cast_to_bf16 and x.dtype == jnp.float32:
        # Optional: halves HBM traffic for this purely read-bound kernel; the
        # T reduction and the quadratic form stay f32.
        x = x.astype(jnp.bfloat16)
    itemsize = x.dtype.itemsize

    vmem_budget = _vmem_budget_bytes()
    byte_budget = int(0.75 * vmem_budget)     # headroom for Mosaic internals

    # ---- T chunking (minor dim). Prefer the whole T per block: no tail mask.
    if t_chunk is not None:
        tc = min(int(t_chunk), T)
        if tc != T and tc % 128 != 0:
            raise ValueError("t_chunk must equal T or be a multiple of 128")
    elif 3 * 8 * T * itemsize <= byte_budget:
        tc = T
    else:  # only for enormous T: chunk in multiples of 128, mask the tail once
        tc = max(128, min((T // 128) * 128,
                          (byte_budget // (3 * 8 * itemsize)) // 128 * 128))
    num_t_chunks = pl.cdiv(T, tc)
    rem = T % tc

    # ---- Row tiling (second-minor dim, multiple of 8 -> dense sublanes).
    # Per-row VMEM: double-buffered input chunk, (tb,1)->(tb,128)-lane-padded
    # f32 output (x2), plus one chunk-sized temp if the tail chunk is masked.
    per_row = (3 if rem else 2) * tc * itemsize + 2 * 128 * 4
    if row_block is not None:
        tb = _round_up(int(row_block), 8)
    else:
        tb = max(8, (byte_budget // per_row) // 8 * 8)
    # v7x megacore: keep >= 2 tiles on the "parallel" row axis when possible.
    tb = min(tb, _round_up(pl.cdiv(R, 2), 8))
    tb = min(tb, _round_up(R, 8))
    tb = max(tb, 8)

    num_row_tiles = pl.cdiv(R, tb)
    r_pad = num_row_tiles * tb

    kernel = functools.partial(_row_tsum_kernel, total_t=T,
                               num_t_chunks=num_t_chunks)

    sums = pl.pallas_call(
        kernel,
        out_shape=jax.ShapeDtypeStruct((r_pad, 1), jnp.float32),
        grid=(num_row_tiles, num_t_chunks),
        in_specs=[pl.BlockSpec((tb, tc), lambda i, j: (i, j))],
        out_specs=pl.BlockSpec((tb, 1), lambda i, j: (i, 0)),
        compiler_params=pltpu.CompilerParams(
            dimension_semantics=("parallel", "arbitrary"),
            vmem_limit_bytes=int(vmem_budget)),
    )(x)

    # Quadratic form + folding of the two 1/T means and the penalty: a few
    # microseconds of XLA work on a (N*C, 25) array.  Stale tail rows are
    # sliced off here (each output row depends only on its own input row, so
    # they cannot pollute valid rows).
    s = sums[:R, 0].reshape(N * C, V)                      # f32 per-row T-sums
    quad = jnp.einsum("bv,vw,bw->", s, L, s,
                      precision=jax.lax.Precision.HIGHEST)
    # NOTE: summing over T before the 1/T^2 scale grows the intermediate; for
    # skeleton-scale data this is nowhere near f32 overflow.
    scale = jnp.float32(penalty) / (jnp.float32(T) * jnp.float32(T))
    return quad * scale


# ----------------------------------------------------------------------------
# Pure-JAX reference (mirrors the PyTorch loops) for a silent sanity check
# ----------------------------------------------------------------------------
def _reference(target, penalty):
    L = build_laplacian()
    m = jnp.mean(target.astype(jnp.float32), axis=-1)      # (N, C, V)
    return jnp.einsum("ncv,vw,ncw->", m, L, m,
                      precision=jax.lax.Precision.HIGHEST) * jnp.float32(penalty)


if __name__ == "__main__":
    key = jax.random.PRNGKey(0)
    k1, k2 = jax.random.split(key)
    penalty = 0.1

    # Test 1: fp32 input, whole-T block, 2 row tiles on the parallel axis.
    N, C, V, T = 2, 4, 25, 16
    target = jax.random.normal(k1, (N, C, V, T), dtype=jnp.float32)
    out = jax.block_until_ready(laplacian_regularizer(target, penalty))
    ref = _reference(target, penalty)
    np.testing.assert_allclose(np.asarray(out), np.asarray(ref),
                               rtol=1e-4, atol=1e-4)

    # Test 2: bf16 input (MXU reduction path), forced T-chunking with a masked
    # ragged tail chunk and a partial last row tile (both remainder paths).
    N2, C2, T2 = 2, 3, 160
    target2 = jax.random.normal(k2, (N2, C2, 25, T2)).astype(jnp.bfloat16)
    out2 = jax.block_until_ready(
        laplacian_regularizer(target2, penalty, row_block=64, t_chunk=128))
    ref2 = _reference(target2, penalty)
    np.testing.assert_allclose(np.asarray(out2), np.asarray(ref2),
                               rtol=1e-2, atol=1e-3)

    print("KERNEL_OK")
</pallas_src>

<mosaic_0001>
module attributes {stable_mosaic.version = 11 : i64} {
  func.func @_row_tsum_kernel(%arg0: i32, %arg1: i32, %arg2: memref<104x16xf32, #tpu.memory_space<vmem>>, %arg3: memref<104x1xf32, #tpu.memory_space<vmem>>) attributes {dimension_semantics = [#tpu.dimension_semantics<parallel>, #tpu.dimension_semantics<arbitrary>], iteration_bounds = array<i64: 2, 1>, scalar_prefetch = 0 : i64, scratch_operands = 0 : i64, tpu.core_type = #tpu.core_type<tc>, window_params = [{transform_indices = @transform_0, window_bounds = array<i64: 104, 16>}, {transform_indices = @transform_1, window_bounds = array<i64: 104, 1>}]} {
    %c0 = arith.constant 0 : index
    %c0_0 = arith.constant 0 : index
    %0 = vector.load %arg2[%c0, %c0_0] : memref<104x16xf32, #tpu.memory_space<vmem>>, vector<104x16xf32>
    %cst = arith.constant dense<0.000000e+00> : vector<104xf32>
    %1 = vector.multi_reduction <add>, %0, %cst [1] : vector<104x16xf32> to vector<104xf32>
    %2 = vector.shape_cast %1 : vector<104xf32> to vector<104x1xf32>
    %c0_1 = arith.constant 0 : index
    %c0_2 = arith.constant 0 : index
    %3 = vector.load %arg3[%c0_1, %c0_2] : memref<104x1xf32, #tpu.memory_space<vmem>>, vector<104x1xf32>
    tpu.vector_store %arg3[%c0_1, %c0_2], %2 {strides = array<i32>} : memref<104x1xf32, #tpu.memory_space<vmem>>, vector<104x1xf32>,
    return
  }
  func.func @transform_0(%arg0: i32, %arg1: i32) -> (i32, i32) {
    %c0_i32 = arith.constant 0 : i32
    return %arg0, %arg1 : i32, i32
  }
  func.func @transform_1(%arg0: i32, %arg1: i32) -> (i32, i32) {
    %c0_i32 = arith.constant 0 : i32
    %c0_i32_0 = arith.constant 0 : i32
    return %arg0, %c0_i32 : i32, i32
  }
}

</mosaic_0001>

<llo_original>
// kernel: tpu_custom_call.1
$region0: #{tpu_custom_call.1}
  #allocation0 [shape = 'u32[]', space=smem, size = 0x4, offset = 0x4, fixed_abs, tag = 'smem constant byte address 0x4 - core index']
  #allocation1 [shape = 'u32[144,128]{1,0:T(1,128)}', space=vmem, size = 0x12000, scoped, tag = 'internal scratch']
  %s0 = inlined_call_operand.vmem [shape: f32[200,16], index: 0, kind: input, shape index: {}]
  %s1 = inlined_call_operand.vmem [shape: f32[208,1], index: 1, kind: output, shape index: {}]
  %s2 = sld [smem:[#allocation0]]
  $region37: #{tpu_custom_call.1} parent=0
    _
  %s4 = ssub.s32 1, %s2
  %s5 = scalar_select 0, %s4, %s2
  loop: start=0, step=1, limit=4
  $region2: #{tpu_custom_call.1} parent=0 // loop_pre_header
    _
  $region3: #{tpu_custom_call.1} parent=0 // loop_header
    %s7 = sphi 0, %s11
    %p8 = scmp.ge.s32.totalorder %s7, 4
    %s14 = sphi 0, %s26
    %s15 = sphi 0, %s22
    %s16 = sphi 0, %s14
    %s17 = sphi 0, %s15
    %s18 = sphi 0, %s16
    %s19 = sphi 0, %s17
    %s31 = sphi 0, %s33
    %s34 = sphi 0, %s31
    %s35 = sphi 0, %s34
    %s51 = sphi 0, %s35
    %s57 = sphi 0, %s59
    %s60 = sphi 0, %s57
    %s61 = sphi 0, %s60
    %s77 = sphi 0, %s61
  $region4: #{tpu_custom_call.1} parent=0 // loop_header_branch
    %10 = sbr.rel (%p8) target = $region8
  $region5: #{tpu_custom_call.1} parent=0 // loop_body
    %s12 = ssub.s32 %s7, 1
    %s13 = ssub.s32 %s7, 2
    %s20 = sadd.s32 1, %s15
    %p21 = scmp.ge.s32.totalorder %s20, 1
    %s22 = scalar_select %p21, 0, %s20
    %s23 = sadd.s32 1, %s14
    %s24 = scalar_select %p21, %s23, %s14
    %p25 = scmp.ge.s32.totalorder %s24, 2
    %s26 = scalar_select %p25, 0, %s24
    %s27 = ssub.s32 %s14, %s26
    %s28 = ssub.s32 %s15, %s22
    %s29 = sor.u32 %s27, %s28
    %p30 = scmp.eq.s32.totalorder %s29, 0
    %s32 = sadd.s32 %s31, 1
    %s33 = scalar_select %p30, %s31, %s32
    %p36 = pneg %p30
    %p37 = scmp.eq.s32.totalorder %s7, 1
    %p38 = por %p36, %p37
    %p39 = scmp.ne.s32.totalorder %s31, %s34
    %p40 = scmp.eq.s32.totalorder %s7, 0
    %p41 = por %p39, %p40
    %p42 = scmp.ne.s32.totalorder %s31, %s34
    %p43 = scmp.eq.s32.totalorder %s12, 1
    %p44 = por %p42, %p43
    %p45 = scmp.ne.s32.totalorder %s34, %s35
    %p46 = scmp.eq.s32.totalorder %s12, 0
    %p47 = por %p45, %p46
    %p48 = scmp.ne.s32.totalorder %s34, %s35
    %p49 = scmp.eq.s32.totalorder %s13, 1
    %p50 = por %p48, %p49
    %p52 = scmp.ne.s32.totalorder %s35, %s51
    %p53 = scmp.eq.s32.totalorder %s13, 0
    %p54 = por %p52, %p53
    %s55 = ssub.s32 %s14, %s26
    %p56 = scmp.eq.s32.totalorder %s55, 0
    %s58 = sadd.s32 %s57, 1
    %s59 = scalar_select %p56, %s57, %s58
    %p62 = pneg %p56
    %p63 = scmp.eq.s32.totalorder %s7, 1
    %p64 = por %p62, %p63
    %p65 = scmp.ne.s32.totalorder %s57, %s60
    %p66 = scmp.eq.s32.totalorder %s7, 0
    %p67 = por %p65, %p66
    %p68 = scmp.ne.s32.totalorder %s57, %s60
    %p69 = scmp.eq.s32.totalorder %s12, 1
    %p70 = por %p68, %p69
    %p71 = scmp.ne.s32.totalorder %s60, %s61
    %p72 = scmp.eq.s32.totalorder %s12, 0
    %p73 = por %p71, %p72
    %p74 = scmp.ne.s32.totalorder %s60, %s61
    %p75 = scmp.eq.s32.totalorder %s13, 1
    %p76 = por %p74, %p75
    %p78 = scmp.ne.s32.totalorder %s61, %s77
    %p79 = scmp.eq.s32.totalorder %s13, 0
    %p80 = por %p78, %p79
    %p81 = scmp.le.s32.totalorder 1, %s7
    %p82 = scmp.lt.s32.totalorder %s7, 3
    %p83 = pnand %p81, %p82
    %p84 = pneg %p83
    // Predicated region
    $region9: #{tpu_custom_call.1} parent=5 // pred_check
      _
    $region10: #{tpu_custom_call.1} parent=5 // pred_check_branch
      %86 = sbr.rel (%p83) target = $region12
    $region11: #{tpu_custom_call.1} parent=5 // pred_region
      %s87 = ssub.s32 %s7, 1
    $region12: #{tpu_custom_call.1} parent=5 // pred_fallthru
      _
    %p88 = scmp.lt.s32.totalorder %s7, 2
    // Predicated region
    $region13: #{tpu_custom_call.1} parent=5 // pred_check
      %p89 = pneg %p88
    $region14: #{tpu_custom_call.1} parent=5 // pred_check_branch
      %91 = sbr.rel (%p89) target = $region16
    $region15: #{tpu_custom_call.1} parent=5 // pred_region
      // Predicated region
      $region17: #{tpu_custom_call.1} parent=15 // pred_check
        %p92 = pneg %p41
      $region18: #{tpu_custom_call.1} parent=15 // pred_check_branch
        %94 = sbr.rel (%p92) target = $region20
      $region19: #{tpu_custom_call.1} parent=15 // pred_region
        %s95 = smul.u32 13, %s14
        %s96 = ssub.s32 25, %s95
        %p97 = scmp.lt.s32.totalorder %s96, 13
        %s98 = scalar_select %p97, %s96, 13
        %s99 = smul.u32 128, %s98
        %p100 = scmp.lt.s32.totalorder %s95, 24
        %s101 = scalar_select %p100, %s95, 24
        %p102 = scmp.lt.s32.totalorder %s15, 0
        %s103 = scalar_select %p102, %s15, 0
        %s104 = sadd.s32 %s103, %s101
        %s105 = smul.addr %s104, 8
        %s106 = scalar_lea.vmem %s0, %s105
        %s107 = smul.u32 13, %s14
        %s108 = ssub.s32 25, %s107
        %p109 = scmp.lt.s32.totalorder %s108, 13
        %s110 = scalar_select %p109, %s108, 13
        %s111 = smul.u32 128, %s110
      $region20: #{tpu_custom_call.1} parent=15 // pred_fallthru
        _
    $region16: #{tpu_custom_call.1} parent=5 // pred_fallthru
      _
    %p112 = scmp.le.s32.totalorder 1, %s7
    %p113 = scmp.lt.s32.totalorder %s7, 3
    %p114 = pnand %p112, %p113
    %p115 = pneg %p114
    // Predicated region
    $region21: #{tpu_custom_call.1} parent=5 // pred_check
      _
    $region22: #{tpu_custom_call.1} parent=5 // pred_check_branch
      %117 = sbr.rel (%p114) target = $region24
    $region23: #{tpu_custom_call.1} parent=5 // pred_region
      %s118 = ssub.s32 %s7, 1
      %s119 = smul.u32 13, %s16
      %s120 = ssub.s32 25, %s119
      %p121 = scmp.lt.s32.totalorder %s120, 13
      %s122 = scalar_select %p121, %s120, 13
      %s123 = smul.u32 128, %s122
      %p124 = scmp.lt.s32.totalorder %s119, 24
      %s125 = scalar_select %p124, %s119, 24
      %p126 = scmp.lt.s32.totalorder %s17, 0
      %s127 = scalar_select %p126, %s17, 0
      %s128 = sadd.s32 %s127, %s125
      %s129 = smul.addr %s128, 8
      %s130 = scalar_lea.vmem %s0, %s129
      %p131 = pneg %p47
      %p132 = pneg %p44
      %p133 = pneg %p73
      %p134 = pneg %p70
      %s135 = smul.u32 13, %s16
      %p136 = scmp.lt.s32.totalorder %s135, 25
      %s137 = scalar_select %p136, %s135, 25
      %s138 = smul.addr %s137, 8
      %s139 = scalar_lea.vmem %s1, %s138
      %s140 = smul.u32 13, %s16
      %s141 = ssub.s32 25, %s140
      %p142 = scmp.lt.s32.totalorder %s141, 13
      %s143 = scalar_select %p142, %s141, 13
      %s144 = smul.u32 128, %s143
      %p145 = scmp.lt.s32.totalorder %s140, 24
      %s146 = scalar_select %p145, %s140, 24
      %p147 = scmp.lt.s32.totalorder %s17, 0
      %s148 = scalar_select %p147, %s17, 0
      %s149 = sadd.s32 %s148, %s146
      %s150 = smul.addr %s149, 8
      %s151 = scalar_lea.vmem %s0, %s150
      %s152 = smul.u32 13, %s16
      %s153 = ssub.s32 25, %s152
      %p154 = scmp.lt.s32.totalorder %s153, 13
      %s155 = scalar_select %p154, %s153, 13
      %s156 = smul.u32 128, %s155
      %s157 = smul.u32 13, %s16
      %p158 = scmp.lt.s32.totalorder %s157, 25
      %s159 = scalar_select %p158, %s157, 25
      %s160 = smul.addr %s159, 8
      %s161 = scalar_lea.vmem %s1, %s160
      %s162 = smul.u32 13, %s16
      %v163 = vld [vmem:[%s151] sm:$0xff]
      %v164 = vld [vmem:[%s151 + $0x8] sm:$0xff]
      %v165 = vld [vmem:[%s151 + $0x10] sm:$0xff]
      %v166 = vld [vmem:[%s151 + $0x18] sm:$0xff]
      %v167 = vld [vmem:[%s151 + $0x20] sm:$0xff]
      %v168 = vld [vmem:[%s151 + $0x28] sm:$0xff]
      %v169 = vld [vmem:[%s151 + $0x30] sm:$0xff]
      %v170 = vld [vmem:[%s151 + $0x38] sm:$0xff]
      %v171 = vld [vmem:[%s151 + $0x40] sm:$0xff]
      %v172 = vld [vmem:[%s151 + $0x48] sm:$0xff]
      %v173 = vld [vmem:[%s151 + $0x50] sm:$0xff]
      %v174 = vld [vmem:[%s151 + $0x58] sm:$0xff]
      %v175 = vld [vmem:[%s151 + $0x60] sm:$0xff]
      %vm176 = vcmask 130048
      %v177 = vsel %vm176, %v163, 0.0
      %178 = vadd.xlane.f32.xlu0 %v177
      %v179 = vpop.xlane.xlu0 %178
      %v180 = vsel %vm176, %v164, 0.0
      %181 = vadd.xlane.f32.xlu0 %v180
      %v182 = vpop.xlane.xlu0 %181
      %v183 = vsel %vm176, %v165, 0.0
      %184 = vadd.xlane.f32.xlu0 %v183
      %v185 = vpop.xlane.xlu0 %184
      %v186 = vsel %vm176, %v166, 0.0
      %187 = vadd.xlane.f32.xlu0 %v186
      %v188 = vpop.xlane.xlu0 %187
      %v189 = vsel %vm176, %v167, 0.0
      %190 = vadd.xlane.f32.xlu0 %v189
      %v191 = vpop.xlane.xlu0 %190
      %v192 = vsel %vm176, %v168, 0.0
      %193 = vadd.xlane.f32.xlu0 %v192
      %v194 = vpop.xlane.xlu0 %193
      %v195 = vsel %vm176, %v169, 0.0
      %196 = vadd.xlane.f32.xlu0 %v195
      %v197 = vpop.xlane.xlu0 %196
      %v198 = vsel %vm176, %v170, 0.0
      %199 = vadd.xlane.f32.xlu0 %v198
      %v200 = vpop.xlane.xlu0 %199
      %v201 = vsel %vm176, %v171, 0.0
      %202 = vadd.xlane.f32.xlu0 %v201
      %v203 = vpop.xlane.xlu0 %202
      %v204 = vsel %vm176, %v172, 0.0
      %205 = vadd.xlane.f32.xlu0 %v204
      %v206 = vpop.xlane.xlu0 %205
      %v207 = vsel %vm176, %v173, 0.0
      %208 = vadd.xlane.f32.xlu0 %v207
      %v209 = vpop.xlane.xlu0 %208
      %v210 = vsel %vm176, %v174, 0.0
      %211 = vadd.xlane.f32.xlu0 %v210
      %v212 = vpop.xlane.xlu0 %211
      %v213 = vsel %vm176, %v175, 0.0
      %214 = vadd.xlane.f32.xlu0 %v213
      %v215 = vpop.xlane.xlu0 %214
      %vm216 = vcmask 7168
      %217 = vst.msk [vmem:[%s161] sm:$0xff] %vm216, %v179
      %218 = vst.msk [vmem:[%s161 + $0x8] sm:$0xff] %vm216, %v182
      %219 = vst.msk [vmem:[%s161 + $0x10] sm:$0xff] %vm216, %v185
      %220 = vst.msk [vmem:[%s161 + $0x18] sm:$0xff] %vm216, %v188
      %221 = vst.msk [vmem:[%s161 + $0x20] sm:$0xff] %vm216, %v191
      %222 = vst.msk [vmem:[%s161 + $0x28] sm:$0xff] %vm216, %v194
      %223 = vst.msk [vmem:[%s161 + $0x30] sm:$0xff] %vm216, %v197
      %224 = vst.msk [vmem:[%s161 + $0x38] sm:$0xff] %vm216, %v200
      %225 = vst.msk [vmem:[%s161 + $0x40] sm:$0xff] %vm216, %v203
      %226 = vst.msk [vmem:[%s161 + $0x48] sm:$0xff] %vm216, %v206
      %227 = vst.msk [vmem:[%s161 + $0x50] sm:$0xff] %vm216, %v209
      %228 = vst.msk [vmem:[%s161 + $0x58] sm:$0xff] %vm216, %v212
      %229 = vst.msk [vmem:[%s161 + $0x60] sm:$0xff] %vm216, %v215
      %s230 = smul.u32 13, %s16
      %p231 = scmp.lt.s32.totalorder %s230, 25
      %s232 = scalar_select %p231, %s230, 25
      %s233 = smul.addr %s232, 8
      %s234 = scalar_lea.vmem %s1, %s233
      // Predicated region
      $region25: #{tpu_custom_call.1} parent=23 // pred_check
        %p235 = pneg %p70
      $region26: #{tpu_custom_call.1} parent=23 // pred_check_branch
        %237 = sbr.rel (%p235) target = $region28
      $region27: #{tpu_custom_call.1} parent=23 // pred_region
        %s238 = smul.u32 13, %s16
      $region28: #{tpu_custom_call.1} parent=23 // pred_fallthru
        _
    $region24: #{tpu_custom_call.1} parent=5 // pred_fallthru
      _
    %p239 = scmp.le.s32.totalorder 2, %s7
    // Predicated region
    $region29: #{tpu_custom_call.1} parent=5 // pred_check
      %p240 = pneg %p239
    $region30: #{tpu_custom_call.1} parent=5 // pred_check_branch
      %242 = sbr.rel (%p240) target = $region32
    $region31: #{tpu_custom_call.1} parent=5 // pred_region
      %s243 = ssub.s32 %s7, 2
      // Predicated region
      $region33: #{tpu_custom_call.1} parent=31 // pred_check
        %p244 = pneg %p76
      $region34: #{tpu_custom_call.1} parent=31 // pred_check_branch
        %246 = sbr.rel (%p244) target = $region36
      $region35: #{tpu_custom_call.1} parent=31 // pred_region
        %s247 = smul.u32 13, %s18
        %p248 = scmp.lt.s32.totalorder %s247, 25
        %s249 = scalar_select %p248, %s247, 25
        %s250 = smul.addr %s249, 8
        %s251 = scalar_lea.vmem %s1, %s250
      $region36: #{tpu_custom_call.1} parent=31 // pred_fallthru
        _
    $region32: #{tpu_custom_call.1} parent=5 // pred_fallthru
      _
  $region6: #{tpu_custom_call.1} parent=0 // loop_footer
    %s11 = sadd.s32 1, %s7
  $region7: #{tpu_custom_call.1} parent=0 // loop_footer_branch
    %6 = sbr.rel target = $region3
  $region8: #{tpu_custom_call.1} parent=0 // loop_exit
    _

</llo_original>
